<compile_context>
chip_gen: v6e
topology: v6e:2x2x1
jax: 0.10.0
libtpu: 0.0.40
codegen_flags: <defaults>
</compile_context>

<pallas_src>
import jax
import jax.numpy as jnp
from jax import lax
from jax.experimental import pallas as pl
from jax.experimental.pallas import tpu as pltpu

_LANE = 128
_SUB = 8


def _round_up(x, m):
    return ((x + m - 1) // m) * m


def _device_defaults():
    """Generation-aware defaults (num_parallel, block bytes, vmem limit, recip)."""
    kind = ""
    try:
        kind = jax.devices()[0].device_kind.lower()
    except Exception:
        pass
    if ("v7" in kind) or ("7x" in kind):
        # 2 TensorCores, 64 MiB VMEM/TC, VALU-bound at larger B -> EUP reciprocal.
        return dict(num_parallel=2, target_block_bytes=6 << 20,
                    vmem_limit_bytes=32 * 1024 * 1024, use_approx_recip=True)
    # v5e / v6e (single TC, 128 MiB VMEM, HBM-bound) and conservative fallback.
    return dict(num_parallel=1, target_block_bytes=12 << 20,
                vmem_limit_bytes=48 * 1024 * 1024, use_approx_recip=False)


def _make_l_con_kernel(*, b, c, tr, rc, steps, rows_arr, mask_needed,
                       use_approx_recip):
    """Build the per-tile kernel.

    x_ref:   (B, C, TR, 128) input tile
    o_ref:   (1, 1, 1) per-core partial sum (written on the last step only)
    acc_ref: (RC, 128) f32 running per-pixel partial sums (scratch)
    """
    n_chunks = tr // rc
    inv_c = float(1.0 / c)

    def kernel(x_ref, o_ref, acc_ref):
        p = pl.program_id(0)
        t = pl.program_id(1)

        @pl.when(t == 0)
        def _init():
            acc_ref[...] = jnp.zeros_like(acc_ref)

        # Intended global row start of this tile (used only for masking).
        row0 = (p * steps + t) * tr
        if mask_needed:
            iota = lax.broadcasted_iota(jnp.int32, (rc, _LANE), 0)

        def chunk(ci, carry):
            r0 = pl.multiple_of(ci * rc, rc)
            if mask_needed:
                valid = (row0 + r0 + iota) < rows_arr

            # Load + upcast (+ sanitize) each channel-plane chunk exactly once.
            # Chunks are small enough to stay vreg-resident; no full-tile
            # f32 copy or 3-channel slice is ever materialized.
            planes = []
            for j in range(b):
                per_ch = []
                for k in range(c):
                    v = x_ref[j, k, pl.ds(r0, rc), :].astype(jnp.float32)
                    if mask_needed:
                        # Garbage rows (beyond the array) forced to 1.0 ->
                        # bg == 1, |1 - 1| == 0 -> exactly 0 contribution.
                        v = jnp.where(valid, v, 1.0)
                    per_ch.append(v)
                planes.append(per_ch)

            # Per-image channel mean and its reciprocal (once per pixel per i).
            bgs, invs = [], []
            for i in range(b):
                s = planes[i][0]
                for k in range(1, c):
                    s = s + planes[i][k]
                bg = s * inv_c
                if use_approx_recip:
                    r = pl.reciprocal(bg, approx=True)
                    r = r * (2.0 - bg * r)   # one Newton step: ~1e-7 rel error
                else:
                    r = 1.0 / bg
                bgs.append(bg)
                invs.append(r)

            # Torch broadcast quirk: term[i,j,k] = |x[j,k] - bg[i]| / bg[i].
            # Reduce |rgb - bg_i| over (j, k) with VPU adds, then one multiply
            # by inv_bg[i]. (b is tiny here; for b > ~4 the i/j loops should
            # become a lax.fori_loop to bound code size / vreg live ranges.)
            out = carry
            for i in range(b):
                s_i = None
                for j in range(b):
                    for k in range(3):
                        d = jnp.abs(planes[j][k] - bgs[i])
                        s_i = d if s_i is None else s_i + d
                out = out + s_i * invs[i]
            return out

        zero = jnp.zeros((rc, _LANE), jnp.float32)
        tile_sum = lax.fori_loop(0, n_chunks, chunk, zero,
                                 unroll=(n_chunks <= 4))
        acc_ref[...] = acc_ref[...] + tile_sum

        # Single cross-lane/cross-sublane reduction, only on the final step.
        @pl.when(t == pl.num_programs(1) - 1)
        def _finalize():
            o_ref[...] = jnp.reshape(jnp.sum(acc_ref[...]), (1, 1, 1))

    return kernel


def l_con_pallas(dehaze, *, num_parallel=None, target_block_bytes=None,
                 vmem_limit_bytes=None, use_approx_recip=None):
    """L_con loss. dehaze: (B, C, H, W) float array, C >= 3. Returns scalar f32."""
    b, c, h, w = dehaze.shape
    assert c >= 3, "L_con needs at least 3 channels"
    n = h * w
    itemsize = jnp.dtype(dehaze.dtype).itemsize

    cfg = _device_defaults()
    if num_parallel is None:
        num_parallel = cfg["num_parallel"]
    if target_block_bytes is None:
        target_block_bytes = cfg["target_block_bytes"]
    if vmem_limit_bytes is None:
        vmem_limit_bytes = cfg["vmem_limit_bytes"]
    if use_approx_recip is None:
        use_approx_recip = cfg["use_approx_recip"]

    rows = pl.cdiv(n, _LANE)              # pixel rows of 128 lanes
    rows_arr = _round_up(rows, _SUB)      # array rows (pad granularity 1024 px)

    x = dehaze.reshape(b, c, n)
    if rows_arr * _LANE != n:
        # Minimal pad (< 1024 px/plane) with value 1.0 so padded pixels
        # contribute exactly 0. Most real image sizes skip this copy entirely.
        x = jnp.pad(x, ((0, 0), (0, 0), (0, rows_arr * _LANE - n)),
                    constant_values=1.0)
    x4 = x.reshape(b, c, rows_arr, _LANE)  # lane-dense (rows, 128) planes

    # Parallel split only pays off with >1 TensorCore and enough rows.
    num_parallel = max(1, min(num_parallel, rows_arr // _SUB))
    rows_per_core = pl.cdiv(rows_arr, num_parallel)

    # Tile rows: ~target_block_bytes per input block, multiple of 8 sublanes,
    # never larger than the array rows (no oversized blocks), rebalanced so
    # coverage tracks the data instead of rounding up to the grid.
    tr_cap = max(_SUB,
                 (target_block_bytes // (b * c * _LANE * itemsize)) // _SUB * _SUB)
    tr = min(tr_cap, _round_up(rows_per_core, _SUB))
    steps = pl.cdiv(rows_per_core, tr)
    tr = _round_up(pl.cdiv(rows_per_core, steps), _SUB)

    # Row-chunk size: keep all b*c plane chunks + temporaries vreg-resident.
    rc_target = max(_SUB, min(32, (160 // (b * c)) // _SUB * _SUB))
    rc = _SUB
    for cand in range(rc_target, _SUB - 1, -_SUB):
        if tr % cand == 0:
            rc = cand
            break

    coverage = num_parallel * steps * tr
    mask_needed = coverage != rows_arr            # ragged last tile(s) -> mask rows
    last_block = pl.cdiv(rows_arr, tr) - 1        # clamp so no block is fully OOB

    kernel = _make_l_con_kernel(
        b=b, c=c, tr=tr, rc=rc, steps=steps, rows_arr=rows_arr,
        mask_needed=mask_needed, use_approx_recip=use_approx_recip)

    def in_index_map(p, t):
        return (0, 0, jnp.minimum(p * steps + t, last_block), 0)

    partials = pl.pallas_call(
        kernel,
        out_shape=jax.ShapeDtypeStruct((num_parallel, 1, 1), jnp.float32),
        grid_spec=pltpu.PrefetchScalarGridSpec(
            num_scalar_prefetch=0,
            grid=(num_parallel, steps),
            in_specs=[pl.BlockSpec((b, c, tr, _LANE), in_index_map)],
            out_specs=pl.BlockSpec((1, 1, 1), lambda p, t: (p, 0, 0)),
            scratch_shapes=[pltpu.VMEM((rc, _LANE), jnp.float32)],
        ),
        compiler_params=pltpu.CompilerParams(
            dimension_semantics=("parallel", "arbitrary"),
            vmem_limit_bytes=vmem_limit_bytes,
        ),
    )(x4)

    total = jnp.sum(partials)                     # combine per-core partial sums
    denom = jnp.float32(b * b * n)                # mean over (b, b, h, w)
    return (-total / denom).astype(jnp.float32)


def l_con_reference(dehaze):
    """Pure-JAX reference reproducing the exact PyTorch broadcasting semantics."""
    x = dehaze.astype(jnp.float32)
    background = jnp.mean(x, axis=1, keepdims=True)        # (b, 1, h, w)
    terms = 0.0
    for k in range(3):
        ch = x[:, k, :, :]                                  # (b, h, w)
        # broadcast (b,h,w) vs (b,1,h,w) -> (b,b,h,w), same as torch
        terms = terms + jnp.abs(ch[None, :, :, :] - background) / background
    return -1.0 * jnp.mean(terms)


if __name__ == "__main__":
    key = jax.random.PRNGKey(0)

    # Small test consistent with the module (positive values so the division
    # by the channel mean is well behaved).
    B, C, H, W = 2, 4, 16, 16
    x = jax.random.uniform(key, (B, C, H, W), dtype=jnp.float32,
                           minval=0.1, maxval=1.0)
    loss = jax.block_until_ready(l_con_pallas(x))
    ref = jax.block_until_ready(l_con_reference(x))
    assert jnp.allclose(loss, ref, rtol=1e-5, atol=1e-6), (loss, ref)

    # Second shape that exercises the ragged-tile mask + clamped index map
    # (rows not evenly covered when the grid is split across two cores).
    key2 = jax.random.PRNGKey(0)
    x2 = jax.random.uniform(key2, (2, 4, 64, 80), dtype=jnp.float32,
                            minval=0.1, maxval=1.0)
    loss2 = jax.block_until_ready(l_con_pallas(x2, num_parallel=2))
    ref2 = jax.block_until_ready(l_con_reference(x2))
    assert jnp.allclose(loss2, ref2, rtol=1e-5, atol=1e-6), (loss2, ref2)

    print("KERNEL_OK")
</pallas_src>

<mosaic_0001>
module attributes {stable_mosaic.version = 11 : i64} {
  func.func @kernel(%arg0: i32, %arg1: i32, %arg2: memref<2x4x8x128xf32, #tpu.memory_space<vmem>>, %arg3: memref<1x1x1xf32, #tpu.memory_space<vmem>>, %arg4: memref<8x128xf32, #tpu.memory_space<vmem>>) attributes {dimension_semantics = [#tpu.dimension_semantics<parallel>, #tpu.dimension_semantics<arbitrary>], iteration_bounds = array<i64: 1, 1>, scalar_prefetch = 0 : i64, scratch_operands = 1 : i64, tpu.core_type = #tpu.core_type<tc>, window_params = [{transform_indices = @transform_0, window_bounds = array<i64: 2, 4, 8, 128>}, {transform_indices = @transform_1, window_bounds = array<i64: 1, 1, 1>}]} {
    %c0_i32 = arith.constant 0 : i32
    %0 = arith.cmpi eq, %arg1, %c0_i32 : i32
    %1 = arith.extui %0 : i1 to i32
    %c0_i32_0 = arith.constant 0 : i32
    %2 = arith.cmpi ne, %1, %c0_i32_0 : i32
    scf.if %2 {
      %cst_32 = arith.constant 0.000000e+00 : f32
      %88 = vector.broadcast %cst_32 : f32 to vector<8x128xf32>
      %c0_33 = arith.constant 0 : index
      %c0_34 = arith.constant 0 : index
      %89 = vector.load %arg4[%c0_33, %c0_34] : memref<8x128xf32, #tpu.memory_space<vmem>>, vector<8x128xf32>
      tpu.vector_store %arg4[%c0_33, %c0_34], %88 {strides = array<i32>} : memref<8x128xf32, #tpu.memory_space<vmem>>, vector<8x128xf32>,
    } else {
    }
    %cst = arith.constant 0.000000e+00 : f32
    %3 = vector.broadcast %cst : f32 to vector<8x128xf32>
    %c0_i32_1 = arith.constant 0 : i32
    %c8_i32 = arith.constant 8 : i32
    %4 = arith.muli %c0_i32_1, %c8_i32 : i32
    %5 = tpu.assume_multiple %4, 8 : i32
    %c0 = arith.constant 0 : index
    %c0_2 = arith.constant 0 : index
    %6 = arith.index_cast %5 : i32 to index
    %c0_3 = arith.constant 0 : index
    %7 = vector.load %arg2[%c0, %c0_2, %6, %c0_3] : memref<2x4x8x128xf32, #tpu.memory_space<vmem>>, vector<1x1x8x128xf32>
    %8 = vector.shape_cast %7 : vector<1x1x8x128xf32> to vector<8x128xf32>
    %c0_4 = arith.constant 0 : index
    %c1 = arith.constant 1 : index
    %9 = arith.index_cast %5 : i32 to index
    %c0_5 = arith.constant 0 : index
    %10 = vector.load %arg2[%c0_4, %c1, %9, %c0_5] : memref<2x4x8x128xf32, #tpu.memory_space<vmem>>, vector<1x1x8x128xf32>
    %11 = vector.shape_cast %10 : vector<1x1x8x128xf32> to vector<8x128xf32>
    %c0_6 = arith.constant 0 : index
    %c2 = arith.constant 2 : index
    %12 = arith.index_cast %5 : i32 to index
    %c0_7 = arith.constant 0 : index
    %13 = vector.load %arg2[%c0_6, %c2, %12, %c0_7] : memref<2x4x8x128xf32, #tpu.memory_space<vmem>>, vector<1x1x8x128xf32>
    %14 = vector.shape_cast %13 : vector<1x1x8x128xf32> to vector<8x128xf32>
    %c0_8 = arith.constant 0 : index
    %c3 = arith.constant 3 : index
    %15 = arith.index_cast %5 : i32 to index
    %c0_9 = arith.constant 0 : index
    %16 = vector.load %arg2[%c0_8, %c3, %15, %c0_9] : memref<2x4x8x128xf32, #tpu.memory_space<vmem>>, vector<1x1x8x128xf32>
    %17 = vector.shape_cast %16 : vector<1x1x8x128xf32> to vector<8x128xf32>
    %c1_10 = arith.constant 1 : index
    %c0_11 = arith.constant 0 : index
    %18 = arith.index_cast %5 : i32 to index
    %c0_12 = arith.constant 0 : index
    %19 = vector.load %arg2[%c1_10, %c0_11, %18, %c0_12] : memref<2x4x8x128xf32, #tpu.memory_space<vmem>>, vector<1x1x8x128xf32>
    %20 = vector.shape_cast %19 : vector<1x1x8x128xf32> to vector<8x128xf32>
    %c1_13 = arith.constant 1 : index
    %c1_14 = arith.constant 1 : index
    %21 = arith.index_cast %5 : i32 to index
    %c0_15 = arith.constant 0 : index
    %22 = vector.load %arg2[%c1_13, %c1_14, %21, %c0_15] : memref<2x4x8x128xf32, #tpu.memory_space<vmem>>, vector<1x1x8x128xf32>
    %23 = vector.shape_cast %22 : vector<1x1x8x128xf32> to vector<8x128xf32>
    %c1_16 = arith.constant 1 : index
    %c2_17 = arith.constant 2 : index
    %24 = arith.index_cast %5 : i32 to index
    %c0_18 = arith.constant 0 : index
    %25 = vector.load %arg2[%c1_16, %c2_17, %24, %c0_18] : memref<2x4x8x128xf32, #tpu.memory_space<vmem>>, vector<1x1x8x128xf32>
    %26 = vector.shape_cast %25 : vector<1x1x8x128xf32> to vector<8x128xf32>
    %c1_19 = arith.constant 1 : index
    %c3_20 = arith.constant 3 : index
    %27 = arith.index_cast %5 : i32 to index
    %c0_21 = arith.constant 0 : index
    %28 = vector.load %arg2[%c1_19, %c3_20, %27, %c0_21] : memref<2x4x8x128xf32, #tpu.memory_space<vmem>>, vector<1x1x8x128xf32>
    %29 = vector.shape_cast %28 : vector<1x1x8x128xf32> to vector<8x128xf32>
    %30 = arith.addf %8, %11 : vector<8x128xf32>
    %31 = arith.addf %30, %14 : vector<8x128xf32>
    %32 = arith.addf %31, %17 : vector<8x128xf32>
    %cst_22 = arith.constant 2.500000e-01 : f32
    %33 = vector.broadcast %cst_22 : f32 to vector<8x128xf32>
    %34 = arith.mulf %32, %33 : vector<8x128xf32>
    %cst_23 = arith.constant 1.000000e+00 : f32
    %35 = vector.broadcast %cst_23 : f32 to vector<8x128xf32>
    %36 = arith.divf %35, %34 : vector<8x128xf32>
    %37 = arith.addf %20, %23 : vector<8x128xf32>
    %38 = arith.addf %37, %26 : vector<8x128xf32>
    %39 = arith.addf %38, %29 : vector<8x128xf32>
    %cst_24 = arith.constant 2.500000e-01 : f32
    %40 = vector.broadcast %cst_24 : f32 to vector<8x128xf32>
    %41 = arith.mulf %39, %40 : vector<8x128xf32>
    %cst_25 = arith.constant 1.000000e+00 : f32
    %42 = vector.broadcast %cst_25 : f32 to vector<8x128xf32>
    %43 = arith.divf %42, %41 : vector<8x128xf32>
    %44 = arith.subf %8, %34 : vector<8x128xf32>
    %45 = math.absf %44 : vector<8x128xf32>
    %46 = arith.subf %11, %34 : vector<8x128xf32>
    %47 = math.absf %46 : vector<8x128xf32>
    %48 = arith.addf %45, %47 : vector<8x128xf32>
    %49 = arith.subf %14, %34 : vector<8x128xf32>
    %50 = math.absf %49 : vector<8x128xf32>
    %51 = arith.addf %48, %50 : vector<8x128xf32>
    %52 = arith.subf %20, %34 : vector<8x128xf32>
    %53 = math.absf %52 : vector<8x128xf32>
    %54 = arith.addf %51, %53 : vector<8x128xf32>
    %55 = arith.subf %23, %34 : vector<8x128xf32>
    %56 = math.absf %55 : vector<8x128xf32>
    %57 = arith.addf %54, %56 : vector<8x128xf32>
    %58 = arith.subf %26, %34 : vector<8x128xf32>
    %59 = math.absf %58 : vector<8x128xf32>
    %60 = arith.addf %57, %59 : vector<8x128xf32>
    %61 = arith.mulf %60, %36 : vector<8x128xf32>
    %62 = arith.addf %3, %61 : vector<8x128xf32>
    %63 = arith.subf %8, %41 : vector<8x128xf32>
    %64 = math.absf %63 : vector<8x128xf32>
    %65 = arith.subf %11, %41 : vector<8x128xf32>
    %66 = math.absf %65 : vector<8x128xf32>
    %67 = arith.addf %64, %66 : vector<8x128xf32>
    %68 = arith.subf %14, %41 : vector<8x128xf32>
    %69 = math.absf %68 : vector<8x128xf32>
    %70 = arith.addf %67, %69 : vector<8x128xf32>
    %71 = arith.subf %20, %41 : vector<8x128xf32>
    %72 = math.absf %71 : vector<8x128xf32>
    %73 = arith.addf %70, %72 : vector<8x128xf32>
    %74 = arith.subf %23, %41 : vector<8x128xf32>
    %75 = math.absf %74 : vector<8x128xf32>
    %76 = arith.addf %73, %75 : vector<8x128xf32>
    %77 = arith.subf %26, %41 : vector<8x128xf32>
    %78 = math.absf %77 : vector<8x128xf32>
    %79 = arith.addf %76, %78 : vector<8x128xf32>
    %80 = arith.mulf %79, %43 : vector<8x128xf32>
    %81 = arith.addf %62, %80 : vector<8x128xf32>
    %c1_i32 = arith.constant 1 : i32
    %c0_26 = arith.constant 0 : index
    %c0_27 = arith.constant 0 : index
    %82 = vector.load %arg4[%c0_26, %c0_27] : memref<8x128xf32, #tpu.memory_space<vmem>>, vector<8x128xf32>
    %83 = arith.addf %82, %81 : vector<8x128xf32>
    %c0_28 = arith.constant 0 : index
    %c0_29 = arith.constant 0 : index
    %84 = vector.load %arg4[%c0_28, %c0_29] : memref<8x128xf32, #tpu.memory_space<vmem>>, vector<8x128xf32>
    tpu.vector_store %arg4[%c0_28, %c0_29], %83 {strides = array<i32>} : memref<8x128xf32, #tpu.memory_space<vmem>>, vector<8x128xf32>,
    %c0_i32_30 = arith.constant 0 : i32
    %85 = arith.cmpi eq, %arg1, %c0_i32_30 : i32
    %86 = arith.extui %85 : i1 to i32
    %c0_i32_31 = arith.constant 0 : i32
    %87 = arith.cmpi ne, %86, %c0_i32_31 : i32
    scf.if %87 {
      %c0_32 = arith.constant 0 : index
      %c0_33 = arith.constant 0 : index
      %88 = vector.load %arg4[%c0_32, %c0_33] : memref<8x128xf32, #tpu.memory_space<vmem>>, vector<8x128xf32>
      %89 = vector.shape_cast %88 : vector<8x128xf32> to vector<1x8x128xf32>
      %cst_34 = arith.constant dense<0.000000e+00> : vector<1xf32>
      %90 = vector.multi_reduction <add>, %89, %cst_34 [1, 2] : vector<1x8x128xf32> to vector<1xf32>
      %91 = vector.shape_cast %90 : vector<1xf32> to vector<1x1x1xf32>
      %92 = vector.extract %91[0, 0, 0] : f32 from vector<1x1x1xf32>
      %93 = vector.broadcast %92 : f32 to vector<1x1x1xf32>
      %c0_35 = arith.constant 0 : index
      %c0_36 = arith.constant 0 : index
      %c0_37 = arith.constant 0 : index
      %94 = vector.load %arg3[%c0_35, %c0_36, %c0_37] : memref<1x1x1xf32, #tpu.memory_space<vmem>>, vector<1x1x1xf32>
      tpu.vector_store %arg3[%c0_35, %c0_36, %c0_37], %93 {strides = array<i32>} : memref<1x1x1xf32, #tpu.memory_space<vmem>>, vector<1x1x1xf32>,
    } else {
    }
    return
  }
  func.func @transform_0(%arg0: i32, %arg1: i32) -> (i32, i32, i32, i32) {
    %c1_i32 = arith.constant 1 : i32
    %0 = arith.muli %arg0, %c1_i32 : i32
    %1 = arith.addi %0, %arg1 : i32
    %c0_i32 = arith.constant 0 : i32
    %2 = arith.minsi %1, %c0_i32 : i32
    %c0_i32_0 = arith.constant 0 : i32
    %c0_i32_1 = arith.constant 0 : i32
    %c0_i32_2 = arith.constant 0 : i32
    %c0_i32_3 = arith.constant 0 : i32
    return %c0_i32_0, %c0_i32_1, %2, %c0_i32_2 : i32, i32, i32, i32
  }
  func.func @transform_1(%arg0: i32, %arg1: i32) -> (i32, i32, i32) {
    %c0_i32 = arith.constant 0 : i32
    %c0_i32_0 = arith.constant 0 : i32
    %c0_i32_1 = arith.constant 0 : i32
    return %arg0, %c0_i32, %c0_i32_0 : i32, i32, i32
  }
}

</mosaic_0001>

<llo_original>
// kernel: tpu_custom_call.1
$region0: #{tpu_custom_call.1}
  #allocation0 [shape = 'u32[]', space=smem, size = 0x4, offset = 0x4, fixed_abs, tag = 'smem constant byte address 0x4 - core index']
  #allocation1 [shape = 'u32[144,128]{1,0:T(1,128)}', space=vmem, size = 0x12000, scoped, tag = 'internal scratch']
  #allocation2 [shape = 'f32[8,128]{1,0:T(8,128)}', space=vmem, size = 0x1000, scoped, tag = 'scratch operand']
  %s0 = inlined_call_operand.hbm [shape: f32[2,4,8,128], index: 0, kind: input, shape index: {}]
  %s1 = inlined_call_operand.hbm [shape: f32[1,1,1], index: 1, kind: output, shape index: {}]
  %s2 = sld [smem:[#allocation0]]
  $region26: #{tpu_custom_call.1} parent=0
    _
  %s4 = ssub.s32 1, %s2
  %s5 = scalar_select 0, %s4, %s2
  $region1: #{tpu_custom_call.1} parent=0
    #allocation3 [shape = 'u8[32768]{0}', space=vmem, size = 0x8000, scoped, tag = 'input window, operand 0, single buffered']
    #allocation4 [shape = 's32[1]{0}', space=sflag, size = 0x4, scoped, tag = 'scoped memory for tpu_custom_call.1']
    #allocation5 [shape = 's32[1]{0}', space=sflag, size = 0x4, scoped, tag = 'scoped memory for tpu_custom_call.1']
    #allocation6 [shape = 'u8[512]{0}', space=vmem, size = 0x400, scoped, tag = 'output window, operand 0, single buffered']
    %6 = vsyncpa [#allocation4], 0
    %7 = vsyncpa [#allocation5], 0
    // Predicated region
    $region2: #{tpu_custom_call.1} parent=1 // pred_check
      _
    $region3: #{tpu_custom_call.1} parent=1 // pred_check_branch
      %9 = sbr.rel (0) target = $region5
    $region4: #{tpu_custom_call.1} parent=1 // pred_region
      %s10 = sadd.s32 0, 0
      %p11 = scmp.lt.s32.totalorder %s10, 0
      %s12 = scalar_select %p11, %s10, 0
      %s14 = ssub.s32 1024, 1024
      %15 = vsyncadd [#allocation4], %s14
      %s16 = smul.addr %s12, 128
      %s17 = scalar_lea.hbm %s0, %s16
      %s18 = sshll.u32 [#allocation3], 4
      %s19 = int_to_ptr.vmem [resolvable:$true] %s18
      %24 = dma.hbm_to_vmem [thread:$0]  %s17, 1024, %s19, [#allocation4], 128, 128, 8
    $region5: #{tpu_custom_call.1} parent=1 // pred_fallthru
      _
    // Predicated region
    $region6: #{tpu_custom_call.1} parent=1 // pred_check
      _
    $region7: #{tpu_custom_call.1} parent=1 // pred_check_branch
      %26 = sbr.rel (0) target = $region9
    $region8: #{tpu_custom_call.1} parent=1 // pred_region
      %27 = dma.done [#allocation4], 1024
    $region9: #{tpu_custom_call.1} parent=1 // pred_fallthru
      _
    %s28 = sadd.s32 0, 0
    %p29 = scmp.lt.s32.totalorder %s28, 0
    %s30 = scalar_select %p29, %s28, 0
    %p31 = scmp.eq.s32.totalorder 0, 0
    // Predicated region
    $region10: #{tpu_custom_call.1} parent=1 // pred_check
      %p32 = pneg %p31
    $region11: #{tpu_custom_call.1} parent=1 // pred_check_branch
      %34 = sbr.rel (%p32) target = $region13
    $region12: #{tpu_custom_call.1} parent=1 // pred_region
      %35 = vst [vmem:[#allocation2] sm:$0xff] 0.0
    $region13: #{tpu_custom_call.1} parent=1 // pred_fallthru
      _
    %v36 = vld [vmem:[#allocation3] sm:$0xff]
    %s37 = sadd.s32 0, 8
    %s38 = scalar_lea.vmem [#allocation3], %s37
    %v39 = vld [vmem:[%s38] sm:$0xff]
    %s40 = sadd.s32 0, 16
    %s41 = scalar_lea.vmem [#allocation3], %s40
    %v42 = vld [vmem:[%s41] sm:$0xff]
    %s43 = sadd.s32 0, 24
    %s44 = scalar_lea.vmem [#allocation3], %s43
    %v45 = vld [vmem:[%s44] sm:$0xff]
    %s46 = sadd.s32 0, 32
    %s47 = scalar_lea.vmem [#allocation3], %s46
    %v48 = vld [vmem:[%s47] sm:$0xff]
    %s49 = sadd.s32 %s37, 32
    %s50 = scalar_lea.vmem [#allocation3], %s49
    %v51 = vld [vmem:[%s50] sm:$0xff]
    %s52 = sadd.s32 %s40, 32
    %s53 = scalar_lea.vmem [#allocation3], %s52
    %v54 = vld [vmem:[%s53] sm:$0xff]
    %s55 = sadd.s32 %s43, 32
    %s56 = scalar_lea.vmem [#allocation3], %s55
    %v57 = vld [vmem:[%s56] sm:$0xff]
    %v58 = vadd.f32 %v36, %v39
    %v59 = vadd.f32 %v58, %v42
    %v60 = vadd.f32 %v59, %v45
    %v61 = vmul.f32 %v60, 0.25
    %v62 = vrcp.pop %v61
    %v63 = vmul.f32 1.0, %v62
    %v64 = vadd.f32 %v48, %v51
    %v65 = vadd.f32 %v64, %v54
    %v66 = vadd.f32 %v65, %v57
    %v67 = vmul.f32 %v66, 0.25
    %v68 = vrcp.pop %v67
    %v69 = vmul.f32 1.0, %v68
    %v70 = vsub.f32 %v36, %v61
    %v71 = vand.u32 2147483647, %v70
    %v72 = vsub.f32 %v39, %v61
    %v73 = vand.u32 2147483647, %v72
    %v74 = vadd.f32 %v71, %v73
    %v75 = vsub.f32 %v42, %v61
    %v76 = vand.u32 2147483647, %v75
    %v77 = vadd.f32 %v74, %v76
    %v78 = vsub.f32 %v48, %v61
    %v79 = vand.u32 2147483647, %v78
    %v80 = vadd.f32 %v77, %v79
    %v81 = vsub.f32 %v51, %v61
    %v82 = vand.u32 2147483647, %v81
    %v83 = vadd.f32 %v80, %v82
    %v84 = vsub.f32 %v54, %v61
    %v85 = vand.u32 2147483647, %v84
    %v86 = vadd.f32 %v83, %v85
    %v87 = vmul.f32 %v86, %v63
    %v88 = vadd.f32 %v87, 0.0
    %v89 = vsub.f32 %v36, %v67
    %v90 = vand.u32 2147483647, %v89
    %v91 = vsub.f32 %v39, %v67
    %v92 = vand.u32 2147483647, %v91
    %v93 = vadd.f32 %v90, %v92
    %v94 = vsub.f32 %v42, %v67
    %v95 = vand.u32 2147483647, %v94
    %v96 = vadd.f32 %v93, %v95
    %v97 = vsub.f32 %v48, %v67
    %v98 = vand.u32 2147483647, %v97
    %v99 = vadd.f32 %v96, %v98
    %v100 = vsub.f32 %v51, %v67
    %v101 = vand.u32 2147483647, %v100
    %v102 = vadd.f32 %v99, %v101
    %v103 = vsub.f32 %v54, %v67
    %v104 = vand.u32 2147483647, %v103
    %v105 = vadd.f32 %v102, %v104
    %v106 = vmul.f32 %v105, %v69
    %v107 = vadd.f32 %v88, %v106
    %v108 = vld [vmem:[#allocation2] sm:$0xff]
    %v109 = vadd.f32 %v108, %v107
    %110 = vst [vmem:[#allocation2] sm:$0xff] %v109
    // Predicated region
    $region14: #{tpu_custom_call.1} parent=1 // pred_check
      %p111 = pneg %p31
    $region15: #{tpu_custom_call.1} parent=1 // pred_check_branch
      %113 = sbr.rel (%p111) target = $region17
    $region16: #{tpu_custom_call.1} parent=1 // pred_region
      %v114 = vld [vmem:[#allocation2] sm:$0xff]
      %115 = vadd.xlane.f32.xlu0 %v114
      %v116 = vpop.xlane.xlu0 %115
      %v117 = vrot.slane %v116, 4
      %v118 = vadd.f32 %v116, %v117
      %v119 = vrot.slane %v118, 2
      %v120 = vadd.f32 %v118, %v119
      %v121 = vrot.slane %v120, 1
      %v122 = vadd.f32 %v120, %v121
      %s123 = vtos %v122
      %v124 = vstv %s123
      %vm125 = vcmask 0
      %126 = vst.msk [vmem:[#allocation6] sm:$0x1] %vm125, %v124
    $region17: #{tpu_custom_call.1} parent=1 // pred_fallthru
      _
    // Predicated region
    $region18: #{tpu_custom_call.1} parent=1 // pred_check
      _
    $region19: #{tpu_custom_call.1} parent=1 // pred_check_branch
      %128 = sbr.rel (0) target = $region21
    $region20: #{tpu_custom_call.1} parent=1 // pred_region
      %s130 = ssub.s32 16, 16
      %131 = vsyncadd [#allocation5], %s130
      %s133 = sshll.u32 [#allocation6], 4
      %s134 = int_to_ptr.vmem [resolvable:$true] %s133
      %136 = dma.vmem_to_hbm [thread:$0]  %s134, 16, %s1, [#allocation5]
    $region21: #{tpu_custom_call.1} parent=1 // pred_fallthru
      _
    // Predicated region
    $region22: #{tpu_custom_call.1} parent=1 // pred_check
      _
    $region23: #{tpu_custom_call.1} parent=1 // pred_check_branch
      %138 = sbr.rel (0) target = $region25
    $region24: #{tpu_custom_call.1} parent=1 // pred_region
      %139 = dma.done [#allocation5], 16
    $region25: #{tpu_custom_call.1} parent=1 // pred_fallthru
      _
    %140 = vsyncpa [#allocation4], 1
    %141 = vsyncpa [#allocation5], 1

</llo_original>
